<compile_context>
chip_gen: v5e
topology: v5e:2x2
jax: 0.10.0
libtpu: 0.0.40
codegen_flags: <defaults>
</compile_context>

<pallas_src>
import jax
import jax.numpy as jnp
import numpy as np
from jax import lax
from jax.experimental import pallas as pl
from jax.experimental.pallas import tpu as pltpu  # noqa: F401  (imported for completeness)

# ---- problem sizes (small, consistent with the module) --------------------------------
B, L, D, H, HID = 2, 8, 32, 4, 64     # batch, seq (pad_size), dim_model, num_head, ffn hidden
DH = D // H                           # dim_head = 8
N = B * L                             # 16 token rows
NF = N * H                            # 64 rows of the flat (B*H, L, DH) "view"
NCHUNK = D // DH                      # 4 column chunks of width DH per row
LN_EPS = 1e-5
SCALE = float(DH) ** -0.5

# ---- constant-slab row layout: one lane-dense (360,128) f32 array, one DMA -------------
R_SEL, R_MASK, R_SELT, R_W2, R_WQKV, R_WO, R_W1, R_BIAS = 0, 64, 128, 192, 256, 288, 320, 352
CONST_ROWS = 360                      # multiple of 8


# ---- in-kernel / reference helper -------------------------------------------------------
def _layer_norm(x, gamma, beta):
    mu = jnp.mean(x, axis=-1, keepdims=True)
    var = jnp.mean((x - mu) ** 2, axis=-1, keepdims=True)
    return (x - mu) * lax.rsqrt(var + LN_EPS) * gamma + beta


# ---- the single fused kernel ------------------------------------------------------------
def encoder_kernel(x_ref, c_ref, o_ref):
    f32 = jnp.float32
    x = x_ref[...]                                        # (16, 32)

    # static slices of the packed constant slab (all sublane offsets are multiples of 8,
    # all slices start at lane 0)
    sel_flat = c_ref[R_SEL:R_SEL + NF, 0:NF]              # (64,64)  [S_0|S_1|S_2|S_3]
    mask     = c_ref[R_MASK:R_MASK + NF, 0:NF]            # (64,64)  additive block-diag mask
    selT_all = c_ref[R_SELT:R_SELT + NF, 0:NF]            # (64,64)  [S_0^T; S_1^T; S_2^T; S_3^T]
    w2       = c_ref[R_W2:R_W2 + HID, 0:D]                # (64,32)
    wqkv     = c_ref[R_WQKV:R_WQKV + D, 0:3 * D]          # (32,96)  interleaved, SCALE folded
    wo       = c_ref[R_WO:R_WO + D, 0:D]                  # (32,32)
    w1       = c_ref[R_W1:R_W1 + D, 0:HID]                # (32,64)
    bias     = c_ref[R_BIAS:R_BIAS + 8, :]                # (8,128)

    bqkv = bias[0:1, 0:3 * D]
    bo   = bias[1:2, 0:D]
    g1   = bias[2:3, 0:D]
    be1  = bias[3:4, 0:D]
    b1   = bias[4:5, 0:HID]
    b2   = bias[5:6, 0:D]
    g2   = bias[6:7, 0:D]
    be2  = bias[7:8, 0:D]

    # ---- fused Q|K|V projection (SCALE already folded into the q columns / q bias) ------
    qkv = jnp.dot(x, wqkv, preferred_element_type=f32) + bqkv        # (16, 96)

    # ---- torch .view(B*H, -1, DH): qkvf[4n+c, :] = qkv[n, 24c:24c+24]  (4 matmuls) ------
    qkvf = None
    for c in range(NCHUNK):
        part = jnp.dot(sel_flat[:, N * c:N * (c + 1)],               # (64,16) 0/1 selector
                       qkv[:, 3 * DH * c:3 * DH * (c + 1)],          # (16,24) [q_c|k_c|v_c]
                       preferred_element_type=f32)                   # (64,24)
        qkvf = part if qkvf is None else qkvf + part
    qf = qkvf[:, 0:DH]
    kf = qkvf[:, DH:2 * DH]
    vf = qkvf[:, 2 * DH:3 * DH]

    # ---- scaled dot-product attention, all 8 (batch*head) groups at once ----------------
    s = lax.dot_general(qf, kf, (((1,), (1,)), ((), ())),
                        preferred_element_type=f32) + mask           # (64, 64)
    s = s - jnp.max(s, axis=-1, keepdims=True)
    p = jnp.exp(s)
    p = p * pl.reciprocal(jnp.sum(p, axis=-1, keepdims=True), approx=True)
    ctxf = jnp.dot(p, vf, preferred_element_type=f32)                # (64, 8)

    # ---- undo the view + output projection (1 + 4 matmuls) ------------------------------
    # parts_all[16c+n, :] = ctxf[4n+c, :] == ctx2d[n, 8c:8c+8]
    parts_all = jnp.dot(selT_all, ctxf, preferred_element_type=f32)  # (64, 8)
    attn = None
    for c in range(NCHUNK):
        part = jnp.dot(parts_all[N * c:N * (c + 1), :],              # (16, 8)
                       wo[DH * c:DH * (c + 1), :],                   # (8, 32)
                       preferred_element_type=f32)                   # (16, 32)
        attn = part if attn is None else attn + part
    attn = attn + bo

    # ---- Multi_Head_Attention tail: (+dropout=id) residual + LayerNorm ------------------
    out1 = _layer_norm(attn + x, g1, be1)

    # ---- Position_wise_Feed_Forward ------------------------------------------------------
    h = jnp.maximum(jnp.dot(out1, w1, preferred_element_type=f32) + b1, 0.0)
    ff = jnp.dot(h, w2, preferred_element_type=f32) + b2
    o_ref[...] = _layer_norm(ff + out1, g2, be2)                     # (16, 32)


# ---- wrapper -----------------------------------------------------------------------------
def pack_params(p):
    """One-time host-side packing of all constants into a single (360,128) f32 slab."""
    pn = {k: np.asarray(v, np.float32) for k, v in p.items()}
    wq = pn["wq"] * SCALE                                  # fold SCALE into Q projection
    bq = pn["bq"] * SCALE

    # interleave QKV weight columns per head chunk: [q_c | k_c | v_c] (24 wide each)
    wqkv_cols, bqkv_cols = [], []
    for c in range(NCHUNK):
        sl = slice(DH * c, DH * (c + 1))
        wqkv_cols += [wq[:, sl], pn["wk"][:, sl], pn["wv"][:, sl]]
        bqkv_cols += [bq[0, sl], pn["bk"][0, sl], pn["bv"][0, sl]]
    wqkv_il = np.concatenate(wqkv_cols, axis=1)            # (32, 96)
    bqkv_il = np.concatenate(bqkv_cols, axis=0)            # (96,)

    # 0/1 selectors for the head-mixing .view:  S_c[r, n] = 1  iff  r == 4n + c
    r = np.arange(NF)[:, None]
    n = np.arange(N)[None, :]
    sels = [(r == NCHUNK * n + c).astype(np.float32) for c in range(NCHUNK)]  # (64,16) each
    sel_flat = np.concatenate(sels, axis=1)                # (64, 64)
    selT_all = np.concatenate([sc.T for sc in sels], axis=0)  # (64, 64)

    # additive block-diagonal attention mask (0 in-group, -1e30 off-group)
    rg = np.arange(NF)[:, None] // L
    cg = np.arange(NF)[None, :] // L
    amask = np.where(rg == cg, 0.0, -1e30).astype(np.float32)

    slab = np.zeros((CONST_ROWS, 128), np.float32)
    slab[R_SEL:R_SEL + NF, 0:NF] = sel_flat
    slab[R_MASK:R_MASK + NF, 0:NF] = amask
    slab[R_SELT:R_SELT + NF, 0:NF] = selT_all
    slab[R_W2:R_W2 + HID, 0:D] = pn["w2"]
    slab[R_WQKV:R_WQKV + D, 0:3 * D] = wqkv_il
    slab[R_WO:R_WO + D, 0:D] = pn["wo"]
    slab[R_W1:R_W1 + D, 0:HID] = pn["w1"]
    slab[R_BIAS + 0, 0:3 * D] = bqkv_il
    slab[R_BIAS + 1, 0:D] = pn["bo"][0]
    slab[R_BIAS + 2, 0:D] = pn["g1"][0]
    slab[R_BIAS + 3, 0:D] = pn["be1"][0]
    slab[R_BIAS + 4, 0:HID] = pn["b1"][0]
    slab[R_BIAS + 5, 0:D] = pn["b2"][0]
    slab[R_BIAS + 6, 0:D] = pn["g2"][0]
    slab[R_BIAS + 7, 0:D] = pn["be2"][0]
    return jnp.asarray(slab)


_COST = pl.CostEstimate(
    flops=655_360,                                   # sum of all in-kernel matmuls
    transcendentals=4_256,                           # exp(64x64) + rsqrt/recip
    bytes_accessed=(N * D + CONST_ROWS * 128 + N * D) * 4,
)


@jax.jit
def encoder_forward(x, const_slab):
    x2d = x.reshape(N, D)
    out = pl.pallas_call(
        encoder_kernel,
        out_shape=jax.ShapeDtypeStruct((N, D), jnp.float32),
        cost_estimate=_COST,
    )(x2d, const_slab)
    return out.reshape(B, L, D)                      # contiguous reinterpretation, exact


# ---- pure-JAX reference (PyTorch semantics, for the sanity check) ------------------------
def encoder_reference(x, p):
    x2d = x.reshape(N, D)
    q = (x2d @ p["wq"] + p["bq"]).reshape(B * H, L, DH)   # same head-mixing view as torch
    k = (x2d @ p["wk"] + p["bk"]).reshape(B * H, L, DH)
    v = (x2d @ p["wv"] + p["bv"]).reshape(B * H, L, DH)
    s = jnp.einsum("gld,gmd->glm", q, k) * SCALE
    a = jax.nn.softmax(s, axis=-1)
    ctx = jnp.einsum("glm,gmd->gld", a, v).reshape(N, D)
    out = ctx @ p["wo"] + p["bo"] + x2d
    out = _layer_norm(out, p["g1"], p["be1"])
    h = jnp.maximum(out @ p["w1"] + p["b1"], 0.0)
    ff = h @ p["w2"] + p["b2"] + out
    return _layer_norm(ff, p["g2"], p["be2"]).reshape(B, L, D)


# ---- deterministic parameter init (PyTorch-Linear-style uniform bounds) ------------------
def make_params(key):
    ks = jax.random.split(key, 10)

    def linear(kw, kb, fan_in, fan_out):
        bound = 1.0 / np.sqrt(fan_in)
        w_t = jax.random.uniform(kw, (fan_in, fan_out), jnp.float32, -bound, bound)
        b = jax.random.uniform(kb, (1, fan_out), jnp.float32, -bound, bound)
        return w_t, b

    wq, bq = linear(ks[0], ks[1], D, D)
    wk, bk = linear(ks[2], ks[3], D, D)
    wv, bv = linear(ks[4], ks[5], D, D)
    wo, bo = linear(ks[6], ks[7], D, D)
    w1, b1 = linear(ks[8], ks[9], D, HID)
    w2, b2 = linear(jax.random.fold_in(key, 100), jax.random.fold_in(key, 101), HID, D)
    return dict(
        wq=wq, bq=bq, wk=wk, bk=bk, wv=wv, bv=bv, wo=wo, bo=bo,
        g1=jnp.ones((1, D), jnp.float32), be1=jnp.zeros((1, D), jnp.float32),
        w1=w1, b1=b1, w2=w2, b2=b2,
        g2=jnp.ones((1, D), jnp.float32), be2=jnp.zeros((1, D), jnp.float32),
    )


if __name__ == "__main__":
    key = jax.random.PRNGKey(0)
    kx, kp = jax.random.split(key)
    x = jax.random.normal(kx, (B, L, D), jnp.float32)
    params = make_params(kp)
    const_slab = pack_params(params)

    out = jax.block_until_ready(encoder_forward(x, const_slab))
    ref = jax.block_until_ready(encoder_reference(x, params))

    assert out.shape == (B, L, D)
    np.testing.assert_allclose(np.asarray(out), np.asarray(ref), rtol=2e-3, atol=2e-3)
    print("KERNEL_OK")
</pallas_src>

<mosaic_0001>
module attributes {stable_mosaic.version = 11 : i64} {
  func.func @encoder_kernel(%arg0: memref<16x32xf32, #tpu.memory_space<vmem>>, %arg1: memref<360x128xf32, #tpu.memory_space<vmem>>, %arg2: memref<16x32xf32, #tpu.memory_space<vmem>>) attributes {dimension_semantics = [], scalar_prefetch = 0 : i64, scratch_operands = 0 : i64, tpu.core_type = #tpu.core_type<tc>} {
    %c0 = arith.constant 0 : index
    %c0_0 = arith.constant 0 : index
    %0 = vector.load %arg0[%c0, %c0_0] : memref<16x32xf32, #tpu.memory_space<vmem>>, vector<16x32xf32>
    %c0_1 = arith.constant 0 : index
    %c0_2 = arith.constant 0 : index
    %1 = vector.load %arg1[%c0_1, %c0_2] : memref<360x128xf32, #tpu.memory_space<vmem>>, vector<64x64xf32>
    %c64 = arith.constant 64 : index
    %c0_3 = arith.constant 0 : index
    %2 = vector.load %arg1[%c64, %c0_3] : memref<360x128xf32, #tpu.memory_space<vmem>>, vector<64x64xf32>
    %c128 = arith.constant 128 : index
    %c0_4 = arith.constant 0 : index
    %3 = vector.load %arg1[%c128, %c0_4] : memref<360x128xf32, #tpu.memory_space<vmem>>, vector<64x64xf32>
    %c192 = arith.constant 192 : index
    %c0_5 = arith.constant 0 : index
    %4 = vector.load %arg1[%c192, %c0_5] : memref<360x128xf32, #tpu.memory_space<vmem>>, vector<64x32xf32>
    %c256 = arith.constant 256 : index
    %c0_6 = arith.constant 0 : index
    %5 = vector.load %arg1[%c256, %c0_6] : memref<360x128xf32, #tpu.memory_space<vmem>>, vector<32x96xf32>
    %c288 = arith.constant 288 : index
    %c0_7 = arith.constant 0 : index
    %6 = vector.load %arg1[%c288, %c0_7] : memref<360x128xf32, #tpu.memory_space<vmem>>, vector<32x32xf32>
    %c320 = arith.constant 320 : index
    %c0_8 = arith.constant 0 : index
    %7 = vector.load %arg1[%c320, %c0_8] : memref<360x128xf32, #tpu.memory_space<vmem>>, vector<32x64xf32>
    %c352 = arith.constant 352 : index
    %c0_9 = arith.constant 0 : index
    %8 = vector.load %arg1[%c352, %c0_9] : memref<360x128xf32, #tpu.memory_space<vmem>>, vector<8x128xf32>
    %9 = vector.extract_strided_slice %8 {offsets = [0, 0], sizes = [1, 96], strides = [1, 1]} : vector<8x128xf32> to vector<1x96xf32>
    %10 = vector.extract_strided_slice %8 {offsets = [1, 0], sizes = [1, 32], strides = [1, 1]} : vector<8x128xf32> to vector<1x32xf32>
    %11 = vector.extract_strided_slice %8 {offsets = [2, 0], sizes = [1, 32], strides = [1, 1]} : vector<8x128xf32> to vector<1x32xf32>
    %12 = vector.extract_strided_slice %8 {offsets = [3, 0], sizes = [1, 32], strides = [1, 1]} : vector<8x128xf32> to vector<1x32xf32>
    %13 = vector.extract_strided_slice %8 {offsets = [4, 0], sizes = [1, 64], strides = [1, 1]} : vector<8x128xf32> to vector<1x64xf32>
    %14 = vector.extract_strided_slice %8 {offsets = [5, 0], sizes = [1, 32], strides = [1, 1]} : vector<8x128xf32> to vector<1x32xf32>
    %15 = vector.extract_strided_slice %8 {offsets = [6, 0], sizes = [1, 32], strides = [1, 1]} : vector<8x128xf32> to vector<1x32xf32>
    %16 = vector.extract_strided_slice %8 {offsets = [7, 0], sizes = [1, 32], strides = [1, 1]} : vector<8x128xf32> to vector<1x32xf32>
    %cst = arith.constant dense<0.000000e+00> : vector<16x96xf32>
    %17 = tpu.matmul %0, %5, %cst {dimension_numbers = #tpu.dot_dimension_numbers<[1], [0], [0], [1], [0, 0, 1, 1], [], []>} : vector<16x32xf32>, vector<32x96xf32>, vector<16x96xf32> -> vector<16x96xf32>
    %18 = vector.broadcast %9 : vector<1x96xf32> to vector<16x96xf32>
    %19 = arith.addf %17, %18 : vector<16x96xf32>
    %20 = vector.extract_strided_slice %1 {offsets = [0, 0], sizes = [64, 16], strides = [1, 1]} : vector<64x64xf32> to vector<64x16xf32>
    %21 = vector.extract_strided_slice %19 {offsets = [0, 0], sizes = [16, 24], strides = [1, 1]} : vector<16x96xf32> to vector<16x24xf32>
    %cst_10 = arith.constant dense<0.000000e+00> : vector<64x24xf32>
    %22 = tpu.matmul %20, %21, %cst_10 {dimension_numbers = #tpu.dot_dimension_numbers<[1], [0], [0], [1], [0, 0, 1, 1], [], []>} : vector<64x16xf32>, vector<16x24xf32>, vector<64x24xf32> -> vector<64x24xf32>
    %23 = vector.extract_strided_slice %1 {offsets = [0, 16], sizes = [64, 16], strides = [1, 1]} : vector<64x64xf32> to vector<64x16xf32>
    %24 = vector.extract_strided_slice %19 {offsets = [0, 24], sizes = [16, 24], strides = [1, 1]} : vector<16x96xf32> to vector<16x24xf32>
    %cst_11 = arith.constant dense<0.000000e+00> : vector<64x24xf32>
    %25 = tpu.matmul %23, %24, %cst_11 {dimension_numbers = #tpu.dot_dimension_numbers<[1], [0], [0], [1], [0, 0, 1, 1], [], []>} : vector<64x16xf32>, vector<16x24xf32>, vector<64x24xf32> -> vector<64x24xf32>
    %26 = arith.addf %22, %25 : vector<64x24xf32>
    %27 = vector.extract_strided_slice %1 {offsets = [0, 32], sizes = [64, 16], strides = [1, 1]} : vector<64x64xf32> to vector<64x16xf32>
    %28 = vector.extract_strided_slice %19 {offsets = [0, 48], sizes = [16, 24], strides = [1, 1]} : vector<16x96xf32> to vector<16x24xf32>
    %cst_12 = arith.constant dense<0.000000e+00> : vector<64x24xf32>
    %29 = tpu.matmul %27, %28, %cst_12 {dimension_numbers = #tpu.dot_dimension_numbers<[1], [0], [0], [1], [0, 0, 1, 1], [], []>} : vector<64x16xf32>, vector<16x24xf32>, vector<64x24xf32> -> vector<64x24xf32>
    %30 = arith.addf %26, %29 : vector<64x24xf32>
    %31 = vector.extract_strided_slice %1 {offsets = [0, 48], sizes = [64, 16], strides = [1, 1]} : vector<64x64xf32> to vector<64x16xf32>
    %32 = vector.extract_strided_slice %19 {offsets = [0, 72], sizes = [16, 24], strides = [1, 1]} : vector<16x96xf32> to vector<16x24xf32>
    %cst_13 = arith.constant dense<0.000000e+00> : vector<64x24xf32>
    %33 = tpu.matmul %31, %32, %cst_13 {dimension_numbers = #tpu.dot_dimension_numbers<[1], [0], [0], [1], [0, 0, 1, 1], [], []>} : vector<64x16xf32>, vector<16x24xf32>, vector<64x24xf32> -> vector<64x24xf32>
    %34 = arith.addf %30, %33 : vector<64x24xf32>
    %35 = vector.extract_strided_slice %34 {offsets = [0, 0], sizes = [64, 8], strides = [1, 1]} : vector<64x24xf32> to vector<64x8xf32>
    %36 = vector.extract_strided_slice %34 {offsets = [0, 8], sizes = [64, 8], strides = [1, 1]} : vector<64x24xf32> to vector<64x8xf32>
    %37 = vector.extract_strided_slice %34 {offsets = [0, 16], sizes = [64, 8], strides = [1, 1]} : vector<64x24xf32> to vector<64x8xf32>
    %cst_14 = arith.constant dense<0.000000e+00> : vector<64x64xf32>
    %38 = tpu.matmul %35, %36, %cst_14 {dimension_numbers = #tpu.dot_dimension_numbers<[1], [1], [0], [0], [0, 0, 1, 0], [], []>} : vector<64x8xf32>, vector<64x8xf32>, vector<64x64xf32> -> vector<64x64xf32>
    %39 = arith.addf %38, %2 : vector<64x64xf32>
    %cst_15 = arith.constant dense<0xFF800000> : vector<64xf32>
    %40 = vector.multi_reduction <maximumf>, %39, %cst_15 [1] : vector<64x64xf32> to vector<64xf32>
    %41 = vector.shape_cast %40 : vector<64xf32> to vector<64x1xf32>
    %42 = vector.broadcast %41 : vector<64x1xf32> to vector<64x64xf32>
    %43 = arith.subf %39, %42 : vector<64x64xf32>
    %44 = math.exp %43 : vector<64x64xf32>
    %cst_16 = arith.constant dense<0.000000e+00> : vector<64xf32>
    %45 = vector.multi_reduction <add>, %44, %cst_16 [1] : vector<64x64xf32> to vector<64xf32>
    %46 = vector.shape_cast %45 : vector<64xf32> to vector<64x1xf32>
    %47 = tpu.reciprocal %46 {approx = true} : vector<64x1xf32> -> vector<64x1xf32>
    %48 = vector.broadcast %47 : vector<64x1xf32> to vector<64x64xf32>
    %49 = arith.mulf %44, %48 : vector<64x64xf32>
    %cst_17 = arith.constant dense<0.000000e+00> : vector<64x8xf32>
    %50 = tpu.matmul %49, %37, %cst_17 {dimension_numbers = #tpu.dot_dimension_numbers<[1], [0], [0], [1], [0, 0, 1, 1], [], []>} : vector<64x64xf32>, vector<64x8xf32>, vector<64x8xf32> -> vector<64x8xf32>
    %cst_18 = arith.constant dense<0.000000e+00> : vector<64x8xf32>
    %51 = tpu.matmul %3, %50, %cst_18 {dimension_numbers = #tpu.dot_dimension_numbers<[1], [0], [0], [1], [0, 0, 1, 1], [], []>} : vector<64x64xf32>, vector<64x8xf32>, vector<64x8xf32> -> vector<64x8xf32>
    %52 = vector.extract_strided_slice %51 {offsets = [0, 0], sizes = [16, 8], strides = [1, 1]} : vector<64x8xf32> to vector<16x8xf32>
    %53 = vector.extract_strided_slice %6 {offsets = [0, 0], sizes = [8, 32], strides = [1, 1]} : vector<32x32xf32> to vector<8x32xf32>
    %cst_19 = arith.constant dense<0.000000e+00> : vector<16x32xf32>
    %54 = tpu.matmul %52, %53, %cst_19 {dimension_numbers = #tpu.dot_dimension_numbers<[1], [0], [0], [1], [0, 0, 1, 1], [], []>} : vector<16x8xf32>, vector<8x32xf32>, vector<16x32xf32> -> vector<16x32xf32>
    %55 = vector.extract_strided_slice %51 {offsets = [16, 0], sizes = [16, 8], strides = [1, 1]} : vector<64x8xf32> to vector<16x8xf32>
    %56 = vector.extract_strided_slice %6 {offsets = [8, 0], sizes = [8, 32], strides = [1, 1]} : vector<32x32xf32> to vector<8x32xf32>
    %cst_20 = arith.constant dense<0.000000e+00> : vector<16x32xf32>
    %57 = tpu.matmul %55, %56, %cst_20 {dimension_numbers = #tpu.dot_dimension_numbers<[1], [0], [0], [1], [0, 0, 1, 1], [], []>} : vector<16x8xf32>, vector<8x32xf32>, vector<16x32xf32> -> vector<16x32xf32>
    %58 = arith.addf %54, %57 : vector<16x32xf32>
    %59 = vector.extract_strided_slice %51 {offsets = [32, 0], sizes = [16, 8], strides = [1, 1]} : vector<64x8xf32> to vector<16x8xf32>
    %60 = vector.extract_strided_slice %6 {offsets = [16, 0], sizes = [8, 32], strides = [1, 1]} : vector<32x32xf32> to vector<8x32xf32>
    %cst_21 = arith.constant dense<0.000000e+00> : vector<16x32xf32>
    %61 = tpu.matmul %59, %60, %cst_21 {dimension_numbers = #tpu.dot_dimension_numbers<[1], [0], [0], [1], [0, 0, 1, 1], [], []>} : vector<16x8xf32>, vector<8x32xf32>, vector<16x32xf32> -> vector<16x32xf32>
    %62 = arith.addf %58, %61 : vector<16x32xf32>
    %63 = vector.extract_strided_slice %51 {offsets = [48, 0], sizes = [16, 8], strides = [1, 1]} : vector<64x8xf32> to vector<16x8xf32>
    %64 = vector.extract_strided_slice %6 {offsets = [24, 0], sizes = [8, 32], strides = [1, 1]} : vector<32x32xf32> to vector<8x32xf32>
    %cst_22 = arith.constant dense<0.000000e+00> : vector<16x32xf32>
    %65 = tpu.matmul %63, %64, %cst_22 {dimension_numbers = #tpu.dot_dimension_numbers<[1], [0], [0], [1], [0, 0, 1, 1], [], []>} : vector<16x8xf32>, vector<8x32xf32>, vector<16x32xf32> -> vector<16x32xf32>
    %66 = arith.addf %62, %65 : vector<16x32xf32>
    %67 = vector.broadcast %10 : vector<1x32xf32> to vector<16x32xf32>
    %68 = arith.addf %66, %67 : vector<16x32xf32>
    %69 = arith.addf %68, %0 : vector<16x32xf32>
    %cst_23 = arith.constant dense<0.000000e+00> : vector<16xf32>
    %70 = vector.multi_reduction <add>, %69, %cst_23 [1] : vector<16x32xf32> to vector<16xf32>
    %71 = vector.shape_cast %70 : vector<16xf32> to vector<16x1xf32>
    %cst_24 = arith.constant 3.200000e+01 : f32
    %72 = vector.broadcast %cst_24 : f32 to vector<16x1xf32>
    %73 = arith.divf %71, %72 : vector<16x1xf32>
    %74 = vector.broadcast %73 : vector<16x1xf32> to vector<16x32xf32>
    %75 = arith.subf %69, %74 : vector<16x32xf32>
    %76 = arith.mulf %75, %75 : vector<16x32xf32>
    %cst_25 = arith.constant dense<0.000000e+00> : vector<16xf32>
    %77 = vector.multi_reduction <add>, %76, %cst_25 [1] : vector<16x32xf32> to vector<16xf32>
    %78 = vector.shape_cast %77 : vector<16xf32> to vector<16x1xf32>
    %cst_26 = arith.constant 3.200000e+01 : f32
    %79 = vector.broadcast %cst_26 : f32 to vector<16x1xf32>
    %80 = arith.divf %78, %79 : vector<16x1xf32>
    %81 = vector.broadcast %73 : vector<16x1xf32> to vector<16x32xf32>
    %82 = arith.subf %69, %81 : vector<16x32xf32>
    %cst_27 = arith.constant 9.99999974E-6 : f32
    %83 = vector.broadcast %cst_27 : f32 to vector<16x1xf32>
    %84 = arith.addf %80, %83 : vector<16x1xf32>
    %85 = math.rsqrt %84 : vector<16x1xf32>
    %86 = vector.broadcast %85 : vector<16x1xf32> to vector<16x32xf32>
    %87 = arith.mulf %82, %86 : vector<16x32xf32>
    %88 = vector.broadcast %11 : vector<1x32xf32> to vector<16x32xf32>
    %89 = arith.mulf %87, %88 : vector<16x32xf32>
    %90 = vector.broadcast %12 : vector<1x32xf32> to vector<16x32xf32>
    %91 = arith.addf %89, %90 : vector<16x32xf32>
    %cst_28 = arith.constant dense<0.000000e+00> : vector<16x64xf32>
    %92 = tpu.matmul %91, %7, %cst_28 {dimension_numbers = #tpu.dot_dimension_numbers<[1], [0], [0], [1], [0, 0, 1, 1], [], []>} : vector<16x32xf32>, vector<32x64xf32>, vector<16x64xf32> -> vector<16x64xf32>
    %93 = vector.broadcast %13 : vector<1x64xf32> to vector<16x64xf32>
    %94 = arith.addf %92, %93 : vector<16x64xf32>
    %cst_29 = arith.constant 0.000000e+00 : f32
    %95 = vector.broadcast %cst_29 : f32 to vector<16x64xf32>
    %96 = arith.maximumf %94, %95 : vector<16x64xf32>
    %cst_30 = arith.constant dense<0.000000e+00> : vector<16x32xf32>
    %97 = tpu.matmul %96, %4, %cst_30 {dimension_numbers = #tpu.dot_dimension_numbers<[1], [0], [0], [1], [0, 0, 1, 1], [], []>} : vector<16x64xf32>, vector<64x32xf32>, vector<16x32xf32> -> vector<16x32xf32>
    %98 = vector.broadcast %14 : vector<1x32xf32> to vector<16x32xf32>
    %99 = arith.addf %97, %98 : vector<16x32xf32>
    %100 = arith.addf %99, %91 : vector<16x32xf32>
    %cst_31 = arith.constant dense<0.000000e+00> : vector<16xf32>
    %101 = vector.multi_reduction <add>, %100, %cst_31 [1] : vector<16x32xf32> to vector<16xf32>
    %102 = vector.shape_cast %101 : vector<16xf32> to vector<16x1xf32>
    %cst_32 = arith.constant 3.200000e+01 : f32
    %103 = vector.broadcast %cst_32 : f32 to vector<16x1xf32>
    %104 = arith.divf %102, %103 : vector<16x1xf32>
    %105 = vector.broadcast %104 : vector<16x1xf32> to vector<16x32xf32>
    %106 = arith.subf %100, %105 : vector<16x32xf32>
    %107 = arith.mulf %106, %106 : vector<16x32xf32>
    %cst_33 = arith.constant dense<0.000000e+00> : vector<16xf32>
    %108 = vector.multi_reduction <add>, %107, %cst_33 [1] : vector<16x32xf32> to vector<16xf32>
    %109 = vector.shape_cast %108 : vector<16xf32> to vector<16x1xf32>
    %cst_34 = arith.constant 3.200000e+01 : f32
    %110 = vector.broadcast %cst_34 : f32 to vector<16x1xf32>
    %111 = arith.divf %109, %110 : vector<16x1xf32>
    %112 = vector.broadcast %104 : vector<16x1xf32> to vector<16x32xf32>
    %113 = arith.subf %100, %112 : vector<16x32xf32>
    %cst_35 = arith.constant 9.99999974E-6 : f32
    %114 = vector.broadcast %cst_35 : f32 to vector<16x1xf32>
    %115 = arith.addf %111, %114 : vector<16x1xf32>
    %116 = math.rsqrt %115 : vector<16x1xf32>
    %117 = vector.broadcast %116 : vector<16x1xf32> to vector<16x32xf32>
    %118 = arith.mulf %113, %117 : vector<16x32xf32>
    %119 = vector.broadcast %15 : vector<1x32xf32> to vector<16x32xf32>
    %120 = arith.mulf %118, %119 : vector<16x32xf32>
    %121 = vector.broadcast %16 : vector<1x32xf32> to vector<16x32xf32>
    %122 = arith.addf %120, %121 : vector<16x32xf32>
    %c0_36 = arith.constant 0 : index
    %c0_37 = arith.constant 0 : index
    %123 = vector.load %arg2[%c0_36, %c0_37] : memref<16x32xf32, #tpu.memory_space<vmem>>, vector<16x32xf32>
    tpu.vector_store %arg2[%c0_36, %c0_37], %122 {strides = array<i32>} : memref<16x32xf32, #tpu.memory_space<vmem>>, vector<16x32xf32>,
    return
  }
}

</mosaic_0001>

<llo_original>
// kernel: encoder_forward.1
$region0: #{encoder_forward.1}
  #allocation0 [shape = 'u32[]', space=smem, size = 0x4, offset = 0x4, fixed_abs, tag = 'smem constant byte address 0x4 - core index']
  #allocation1 [shape = 'u32[72,128]{1,0:T(1,128)}', space=vmem, size = 0x9000, scoped, tag = 'internal scratch']
  %s0 = inlined_call_operand.hbm [shape: f32[16,32], index: 0, kind: input, shape index: {}]
  %s1 = inlined_call_operand.hbm [shape: f32[360,128], index: 1, kind: input, shape index: {}]
  %s2 = inlined_call_operand.hbm [shape: f32[16,32], index: 2, kind: output, shape index: {}]
  %s3 = sld [smem:[#allocation0]]
  $region26: #{encoder_forward.1} parent=0
    _
  %s5 = ssub.s32 1, %s3
  %s6 = scalar_select 0, %s5, %s3
  $region1: #{encoder_forward.1} parent=0
    #allocation2 [shape = 'u8[8192]{0}', space=vmem, size = 0x2000, scoped, tag = 'input window, operand 0, single buffered']
    #allocation3 [shape = 's32[1]{0}', space=sflag, size = 0x4, scoped, tag = 'scoped memory for encoder_forward.1']
    #allocation4 [shape = 's32[1]{0}', space=sflag, size = 0x4, scoped, tag = 'scoped memory for encoder_forward.1']
    #allocation5 [shape = 'u8[184320]{0}', space=vmem, size = 0x2d000, scoped, tag = 'input window, operand 1, single buffered']
    #allocation6 [shape = 's32[1]{0}', space=sflag, size = 0x4, scoped, tag = 'scoped memory for encoder_forward.1']
    #allocation7 [shape = 'u8[8192]{0}', space=vmem, size = 0x2000, scoped, tag = 'output window, operand 0, single buffered']
    %7 = vsyncpa [#allocation3], 0
    %8 = vsyncpa [#allocation6], 0
    %9 = vsyncpa [#allocation4], 0
    // Predicated region
    $region2: #{encoder_forward.1} parent=1 // pred_check
      _
    $region3: #{encoder_forward.1} parent=1 // pred_check_branch
      %11 = sbr.rel (0) target = $region5
    $region4: #{encoder_forward.1} parent=1 // pred_region
      %13 = vsyncadd [#allocation3], 0
      %s14 = sshll.u32 %s0, 4
      %s15 = int_to_ptr.hbm [resolvable:$true] %s14
      %s16 = sshll.u32 [#allocation2], 4
      %s17 = int_to_ptr.vmem [resolvable:$true] %s16
      %22 = dma.hbm_to_vmem [thread:$0]  %s15, 256, %s17, [#allocation3], 128, 128, 8
    $region5: #{encoder_forward.1} parent=1 // pred_fallthru
      _
    // Predicated region
    $region6: #{encoder_forward.1} parent=1 // pred_check
      _
    $region7: #{encoder_forward.1} parent=1 // pred_check_branch
      %24 = sbr.rel (0) target = $region9
    $region8: #{encoder_forward.1} parent=1 // pred_region
      %26 = vsyncadd [#allocation6], 0
      %s27 = sshll.u32 %s1, 4
      %s28 = int_to_ptr.hbm [resolvable:$true] %s27
      %s29 = sshll.u32 [#allocation5], 4
      %s30 = int_to_ptr.vmem [resolvable:$true] %s29
      %35 = dma.hbm_to_vmem [thread:$0]  %s28, 5760, %s30, [#allocation6], 128, 128, 8
    $region9: #{encoder_forward.1} parent=1 // pred_fallthru
      _
    // Predicated region
    $region10: #{encoder_forward.1} parent=1 // pred_check
      _
    $region11: #{encoder_forward.1} parent=1 // pred_check_branch
      %37 = sbr.rel (0) target = $region13
    $region12: #{encoder_forward.1} parent=1 // pred_region
      %39 = dma.done [#allocation3], 256
    $region13: #{encoder_forward.1} parent=1 // pred_fallthru
      _
    // Predicated region
    $region14: #{encoder_forward.1} parent=1 // pred_check
      _
    $region15: #{encoder_forward.1} parent=1 // pred_check_branch
      %41 = sbr.rel (0) target = $region17
    $region16: #{encoder_forward.1} parent=1 // pred_region
      %43 = dma.done [#allocation6], 5760
    $region17: #{encoder_forward.1} parent=1 // pred_fallthru
      _
    %v44 = vld [vmem:[#allocation2] sm:$0xff]
    %v45 = vld [vmem:[#allocation2 + $0x8] sm:$0xff]
    %v46 = vld [vmem:[#allocation5] sm:$0xff]
    %v47 = vld [vmem:[#allocation5 + $0x8] sm:$0xff]
    %v48 = vld [vmem:[#allocation5 + $0x10] sm:$0xff]
    %v49 = vld [vmem:[#allocation5 + $0x18] sm:$0xff]
    %v50 = vld [vmem:[#allocation5 + $0x20] sm:$0xff]
    %v51 = vld [vmem:[#allocation5 + $0x28] sm:$0xff]
    %v52 = vld [vmem:[#allocation5 + $0x30] sm:$0xff]
    %v53 = vld [vmem:[#allocation5 + $0x38] sm:$0xff]
    %v54 = vld [vmem:[#allocation5 + $0x40] sm:$0xff]
    %v55 = vld [vmem:[#allocation5 + $0x48] sm:$0xff]
    %v56 = vld [vmem:[#allocation5 + $0x50] sm:$0xff]
    %v57 = vld [vmem:[#allocation5 + $0x58] sm:$0xff]
    %v58 = vld [vmem:[#allocation5 + $0x60] sm:$0xff]
    %v59 = vld [vmem:[#allocation5 + $0x68] sm:$0xff]
    %v60 = vld [vmem:[#allocation5 + $0x70] sm:$0xff]
    %v61 = vld [vmem:[#allocation5 + $0x78] sm:$0xff]
    %v62 = vld [vmem:[#allocation5 + $0x80] sm:$0xff]
    %v63 = vld [vmem:[#allocation5 + $0x88] sm:$0xff]
    %v64 = vld [vmem:[#allocation5 + $0x90] sm:$0xff]
    %v65 = vld [vmem:[#allocation5 + $0x98] sm:$0xff]
    %v66 = vld [vmem:[#allocation5 + $0xa0] sm:$0xff]
    %v67 = vld [vmem:[#allocation5 + $0xa8] sm:$0xff]
    %v68 = vld [vmem:[#allocation5 + $0xb0] sm:$0xff]
    %v69 = vld [vmem:[#allocation5 + $0xb8] sm:$0xff]
    %v70 = vld [vmem:[#allocation5 + $0xc0] sm:$0xff]
    %v71 = vld [vmem:[#allocation5 + $0xc8] sm:$0xff]
    %v72 = vld [vmem:[#allocation5 + $0xd0] sm:$0xff]
    %v73 = vld [vmem:[#allocation5 + $0xd8] sm:$0xff]
    %v74 = vld [vmem:[#allocation5 + $0xe0] sm:$0xff]
    %v75 = vld [vmem:[#allocation5 + $0xe8] sm:$0xff]
    %v76 = vld [vmem:[#allocation5 + $0xf0] sm:$0xff]
    %v77 = vld [vmem:[#allocation5 + $0xf8] sm:$0xff]
    %v78 = vld [vmem:[#allocation5 + $0x100] sm:$0xff]
    %v79 = vld [vmem:[#allocation5 + $0x108] sm:$0xff]
    %v80 = vld [vmem:[#allocation5 + $0x110] sm:$0xff]
    %v81 = vld [vmem:[#allocation5 + $0x118] sm:$0xff]
    %v82 = vld [vmem:[#allocation5 + $0x120] sm:$0xff]
    %v83 = vld [vmem:[#allocation5 + $0x128] sm:$0xff]
    %v84 = vld [vmem:[#allocation5 + $0x130] sm:$0xff]
    %v85 = vld [vmem:[#allocation5 + $0x138] sm:$0xff]
    %v86 = vld [vmem:[#allocation5 + $0x140] sm:$0xff]
    %v87 = vld [vmem:[#allocation5 + $0x148] sm:$0xff]
    %v88 = vld [vmem:[#allocation5 + $0x150] sm:$0xff]
    %v89 = vld [vmem:[#allocation5 + $0x158] sm:$0xff]
    %v90 = vld [vmem:[#allocation5 + $0x160] sm:$0xff]
    %v91 = vperm.slane %v90, 0
    %vm92 = vcmask 261120
    %v94 = vsel %vm92, %v44, 0
    %v97 = vsel %vm92, %v45, 0
    %99 = vmatpush.msra.mxu0 0.0
    %100 = vmatpush.msra.mxu0 0.0
    %101 = vmatpush.msra.mxu0 0.0
    %102 = vmatpush.msra.mxu0 0.0
    %103 = vmatpush.msra.mxu0 0.0
    %104 = vmatpush.msra.mxu0 0.0
    %105 = vmatpush.msra.mxu0 0.0
    %106 = vmatpush.msra.mxu0 0.0
    %107 = vmatpush.msra.mxu0 0.0
    %108 = vmatpush.msra.mxu0 0.0
    %109 = vmatpush.msra.mxu0 0.0
    %110 = vmatpush.msra.mxu0 0.0
    %111 = vmatpush.msra.mxu0 %v81
    %112 = vmatpush.msra.mxu0 %v80
    %113 = vmatpush.msra.mxu0 %v79
    %114 = vmatpush.msra.mxu0 %v78
    %115 = vmatmul.f32.gmra.mxu0 %v94
    %v116 = vpop.f32.mrf.mxu0
    %v117 = vadd.f32 %v91, %v116
    %118 = vmatmul.f32.gmra.mxu0 %v97
    %v119 = vpop.f32.mrf.mxu0
    %v120 = vadd.f32 %v91, %v119
    %121 = vdwg.mxu0
    %130 = vrot.lane.b32.xlu0 %v46, 112
    %v131 = vpop.permute.xlu0 %130
    %132 = vrot.lane.b32.xlu0 %v47, 112
    %v133 = vpop.permute.xlu0 %132
    %134 = vrot.lane.b32.xlu0 %v48, 112
    %v135 = vpop.permute.xlu0 %134
    %136 = vrot.lane.b32.xlu0 %v49, 112
    %v137 = vpop.permute.xlu0 %136
    %138 = vrot.lane.b32.xlu0 %v50, 112
    %v139 = vpop.permute.xlu0 %138
    %140 = vrot.lane.b32.xlu0 %v51, 112
    %v141 = vpop.permute.xlu0 %140
    %142 = vrot.lane.b32.xlu0 %v52, 112
    %v143 = vpop.permute.xlu0 %142
    %144 = vrot.lane.b32.xlu0 %v53, 112
    %v145 = vpop.permute.xlu0 %144
    %148 = vrot.lane.b32.xlu0 %v117, 104
    %v149 = vpop.permute.xlu0 %148
    %150 = vrot.lane.b32.xlu0 %v120, 104
    %v151 = vpop.permute.xlu0 %150
    %vm154 = vcmask 130048
    %v155 = vsel %vm154, %v131, 0
    %v157 = vsel %vm154, %v133, 0
    %v159 = vsel %vm154, %v135, 0
    %v161 = vsel %vm154, %v137, 0
    %v163 = vsel %vm154, %v139, 0
    %v165 = vsel %vm154, %v141, 0
    %v167 = vsel %vm154, %v143, 0
    %v169 = vsel %vm154, %v145, 0
    %171 = vmatpush.msra.mxu0 0.0
    %172 = vmatpush.msra.mxu0 0.0
    %173 = vmatpush.msra.mxu0 0.0
    %174 = vmatpush.msra.mxu0 0.0
    %175 = vmatpush.msra.mxu0 0.0
    %176 = vmatpush.msra.mxu0 0.0
    %177 = vmatpush.msra.mxu0 0.0
    %178 = vmatpush.msra.mxu0 0.0
    %179 = vmatpush.msra.mxu0 0.0
    %180 = vmatpush.msra.mxu0 0.0
    %181 = vmatpush.msra.mxu0 0.0
    %182 = vmatpush.msra.mxu0 0.0
    %183 = vmatpush.msra.mxu0 0.0
    %184 = vmatpush.msra.mxu0 0.0
    %185 = vmatpush.msra.mxu0 %v151
    %186 = vmatpush.msra.mxu0 %v149
    %187 = vmatmul.f32.gmra.mxu0 %v155
    %v188 = vpop.f32.mrf.mxu0
    %v189 = vadd.f32 0.0, %v188
    %190 = vmatmul.f32.gmra.mxu0 %v157
    %v191 = vpop.f32.mrf.mxu0
    %v192 = vadd.f32 0.0, %v191
    %193 = vmatmul.f32.gmra.mxu0 %v159
    %v194 = vpop.f32.mrf.mxu0
    %v195 = vadd.f32 0.0, %v194
    %196 = vmatmul.f32.gmra.mxu0 %v161
    %v197 = vpop.f32.mrf.mxu0
    %v198 = vadd.f32 0.0, %v197
    %199 = vmatmul.f32.gmra.mxu0 %v163
    %v200 = vpop.f32.mrf.mxu0
    %v201 = vadd.f32 0.0, %v200
    %202 = vmatmul.f32.gmra.mxu0 %v165
    %v203 = vpop.f32.mrf.mxu0
    %v204 = vadd.f32 0.0, %v203
    %205 = vmatmul.f32.gmra.mxu0 %v167
    %v206 = vpop.f32.mrf.mxu0
    %v207 = vadd.f32 0.0, %v206
    %208 = vmatmul.f32.gmra.mxu0 %v169
    %v209 = vpop.f32.mrf.mxu0
    %v210 = vadd.f32 0.0, %v209
    %211 = vdwg.mxu0
    %v212 = vsel %vm154, %v46, 0
    %v214 = vsel %vm154, %v47, 0
    %v216 = vsel %vm154, %v48, 0
    %v218 = vsel %vm154, %v49, 0
    %v220 = vsel %vm154, %v50, 0
    %v222 = vsel %vm154, %v51, 0
    %v224 = vsel %vm154, %v52, 0
    %v226 = vsel %vm154, %v53, 0
    %228 = vmatpush.msra.mxu0 0.0
    %229 = vmatpush.msra.mxu0 0.0
    %230 = vmatpush.msra.mxu0 0.0
    %231 = vmatpush.msra.mxu0 0.0
    %232 = vmatpush.msra.mxu0 0.0
    %233 = vmatpush.msra.mxu0 0.0
    %234 = vmatpush.msra.mxu0 0.0
    %235 = vmatpush.msra.mxu0 0.0
    %236 = vmatpush.msra.mxu0 0.0
    %237 = vmatpush.msra.mxu0 0.0
    %238 = vmatpush.msra.mxu0 0.0
    %239 = vmatpush.msra.mxu0 0.0
    %240 = vmatpush.msra.mxu0 0.0
    %241 = vmatpush.msra.mxu0 0.0
    %242 = vmatpush.msra.mxu0 %v120
    %243 = vmatpush.msra.mxu0 %v117
    %244 = vmatmul.f32.gmra.mxu0 %v212
    %v245 = vpop.f32.mrf.mxu0
    %v246 = vadd.f32 %v189, %v245
    %247 = vmatmul.f32.gmra.mxu0 %v214
    %v248 = vpop.f32.mrf.mxu0
    %v249 = vadd.f32 %v192, %v248
    %250 = vmatmul.f32.gmra.mxu0 %v216
    %v251 = vpop.f32.mrf.mxu0
    %v252 = vadd.f32 %v195, %v251
    %253 = vmatmul.f32.gmra.mxu0 %v218
    %v254 = vpop.f32.mrf.mxu0
    %v255 = vadd.f32 %v198, %v254
    %256 = vmatmul.f32.gmra.mxu0 %v220
    %v257 = vpop.f32.mrf.mxu0
    %v258 = vadd.f32 %v201, %v257
    %259 = vmatmul.f32.gmra.mxu0 %v222
    %v260 = vpop.f32.mrf.mxu0
    %v261 = vadd.f32 %v204, %v260
    %262 = vmatmul.f32.gmra.mxu0 %v224
    %v263 = vpop.f32.mrf.mxu0
    %v264 = vadd.f32 %v207, %v263
    %265 = vmatmul.f32.gmra.mxu0 %v226
    %v266 = vpop.f32.mrf.mxu0
    %v267 = vadd.f32 %v210, %v266
    %268 = vdwg.mxu0
    %269 = vrot.lane.b32.xlu0 %v46, 96
    %v270 = vpop.permute.xlu0 %269
    %271 = vrot.lane.b32.xlu0 %v47, 96
    %v272 = vpop.permute.xlu0 %271
    %273 = vrot.lane.b32.xlu0 %v48, 96
    %v274 = vpop.permute.xlu0 %273
    %275 = vrot.lane.b32.xlu0 %v49, 96
    %v276 = vpop.permute.xlu0 %275
    %277 = vrot.lane.b32.xlu0 %v50, 96
    %v278 = vpop.permute.xlu0 %277
    %279 = vrot.lane.b32.xlu0 %v51, 96
    %v280 = vpop.permute.xlu0 %279
    %281 = vrot.lane.b32.xlu0 %v52, 96
    %v282 = vpop.permute.xlu0 %281
    %283 = vrot.lane.b32.xlu0 %v53, 96
    %v284 = vpop.permute.xlu0 %283
    %285 = vrot.lane.b32.xlu0 %v117, 80
    %v286 = vpop.permute.xlu0 %285
    %287 = vrot.lane.b32.xlu0 %v120, 80
    %v288 = vpop.permute.xlu0 %287
    %v291 = vsel %vm154, %v270, 0
    %v293 = vsel %vm154, %v272, 0
    %v295 = vsel %vm154, %v274, 0
    %v297 = vsel %vm154, %v276, 0
    %v299 = vsel %vm154, %v278, 0
    %v301 = vsel %vm154, %v280, 0
    %v303 = vsel %vm154, %v282, 0
    %v305 = vsel %vm154, %v284, 0
    %307 = vmatpush.msra.mxu0 0.0
    %308 = vmatpush.msra.mxu0 0.0
    %309 = vmatpush.msra.mxu0 0.0
    %310 = vmatpush.msra.mxu0 0.0
    %311 = vmatpush.msra.mxu0 0.0
    %312 = vmatpush.msra.mxu0 0.0
    %313 = vmatpush.msra.mxu0 0.0
    %314 = vmatpush.msra.mxu0 0.0
    %315 = vmatpush.msra.mxu0 0.0
    %316 = vmatpush.msra.mxu0 0.0
    %317 = vmatpush.msra.mxu0 0.0
    %318 = vmatpush.msra.mxu0 0.0
    %319 = vmatpush.msra.mxu0 0.0
    %320 = vmatpush.msra.mxu0 0.0
    %321 = vmatpush.msra.mxu0 %v288
    %322 = vmatpush.msra.mxu0 %v286
    %323 = vmatmul.f32.gmra.mxu0 %v291
    %v324 = vpop.f32.mrf.mxu0
    %v325 = vadd.f32 0.0, %v324
    %326 = vmatmul.f32.gmra.mxu0 %v293
    %v327 = vpop.f32.mrf.mxu0
    %v328 = vadd.f32 0.0, %v327
    %329 = vmatmul.f32.gmra.mxu0 %v295
    %v330 = vpop.f32.mrf.mxu0
    %v331 = vadd.f32 0.0, %v330
    %332 = vmatmul.f32.gmra.mxu0 %v297
    %v333 = vpop.f32.mrf.mxu0
    %v334 = vadd.f32 0.0, %v333
    %335 = vmatmul.f32.gmra.mxu0 %v299
    %v336 = vpop.f32.mrf.mxu0
    %v337 = vadd.f32 0.0, %v336
    %338 = vmatmul.f32.gmra.mxu0 %v301
    %v339 = vpop.f32.mrf.mxu0
    %v340 = vadd.f32 0.0, %v339
    %341 = vmatmul.f32.gmra.mxu0 %v303
    %v342 = vpop.f32.mrf.mxu0
    %v343 = vadd.f32 0.0, %v342
    %344 = vmatmul.f32.gmra.mxu0 %v305
    %v345 = vpop.f32.mrf.mxu0
    %v346 = vadd.f32 0.0, %v345
    %347 = vdwg.mxu0
    %v348 = vadd.f32 %v246, %v325
    %v349 = vadd.f32 %v249, %v328
    %v350 = vadd.f32 %v252, %v331
    %v351 = vadd.f32 %v255, %v334
    %v352 = vadd.f32 %v258, %v337
    %v353 = vadd.f32 %v261, %v340
    %v354 = vadd.f32 %v264, %v343
    %v355 = vadd.f32 %v267, %v346
    %356 = vrot.lane.b32.xlu0 %v46, 80
    %v357 = vpop.permute.xlu0 %356
    %358 = vrot.lane.b32.xlu0 %v47, 80
    %v359 = vpop.permute.xlu0 %358
    %360 = vrot.lane.b32.xlu0 %v48, 80
    %v361 = vpop.permute.xlu0 %360
    %362 = vrot.lane.b32.xlu0 %v49, 80
    %v363 = vpop.permute.xlu0 %362
    %364 = vrot.lane.b32.xlu0 %v50, 80
    %v365 = vpop.permute.xlu0 %364
    %366 = vrot.lane.b32.xlu0 %v51, 80
    %v367 = vpop.permute.xlu0 %366
    %368 = vrot.lane.b32.xlu0 %v52, 80
    %v369 = vpop.permute.xlu0 %368
    %370 = vrot.lane.b32.xlu0 %v53, 80
    %v371 = vpop.permute.xlu0 %370
    %372 = vrot.lane.b32.xlu0 %v117, 56
    %v373 = vpop.permute.xlu0 %372
    %374 = vrot.lane.b32.xlu0 %v120, 56
    %v375 = vpop.permute.xlu0 %374
    %v378 = vsel %vm154, %v357, 0
    %v380 = vsel %vm154, %v359, 0
    %v382 = vsel %vm154, %v361, 0
    %v384 = vsel %vm154, %v363, 0
    %v386 = vsel %vm154, %v365, 0
    %v388 = vsel %vm154, %v367, 0
    %v390 = vsel %vm154, %v369, 0
    %v392 = vsel %vm154, %v371, 0
    %394 = vmatpush.msra.mxu0 0.0
    %395 = vmatpush.msra.mxu0 0.0
    %396 = vmatpush.msra.mxu0 0.0
    %397 = vmatpush.msra.mxu0 0.0
    %398 = vmatpush.msra.mxu0 0.0
    %399 = vmatpush.msra.mxu0 0.0
    %400 = vmatpush.msra.mxu0 0.0
    %401 = vmatpush.msra.mxu0 0.0
    %402 = vmatpush.msra.mxu0 0.0
    %403 = vmatpush.msra.mxu0 0.0
    %404 = vmatpush.msra.mxu0 0.0
    %405 = vmatpush.msra.mxu0 0.0
    %406 = vmatpush.msra.mxu0 0.0
    %407 = vmatpush.msra.mxu0 0.0
    %408 = vmatpush.msra.mxu0 %v375
    %409 = vmatpush.msra.mxu0 %v373
    %410 = vmatmul.f32.gmra.mxu0 %v378
    %v411 = vpop.f32.mrf.mxu0
    %v412 = vadd.f32 0.0, %v411
    %413 = vmatmul.f32.gmra.mxu0 %v380
    %v414 = vpop.f32.mrf.mxu0
    %v415 = vadd.f32 0.0, %v414
    %416 = vmatmul.f32.gmra.mxu0 %v382
    %v417 = vpop.f32.mrf.mxu0
    %v418 = vadd.f32 0.0, %v417
    %419 = vmatmul.f32.gmra.mxu0 %v384
    %v420 = vpop.f32.mrf.mxu0
    %v421 = vadd.f32 0.0, %v420
    %422 = vmatmul.f32.gmra.mxu0 %v386
    %v423 = vpop.f32.mrf.mxu0
    %v424 = vadd.f32 0.0, %v423
    %425 = vmatmul.f32.gmra.mxu0 %v388
    %v426 = vpop.f32.mrf.mxu0
    %v427 = vadd.f32 0.0, %v426
    %428 = vmatmul.f32.gmra.mxu0 %v390
    %v429 = vpop.f32.mrf.mxu0
    %v430 = vadd.f32 0.0, %v429
    %431 = vmatmul.f32.gmra.mxu0 %v392
    %v432 = vpop.f32.mrf.mxu0
    %v433 = vadd.f32 0.0, %v432
    %434 = vdwg.mxu0
    %v435 = vadd.f32 %v348, %v412
    %v436 = vadd.f32 %v349, %v415
    %v437 = vadd.f32 %v350, %v418
    %v438 = vadd.f32 %v351, %v421
    %v439 = vadd.f32 %v352, %v424
    %v440 = vadd.f32 %v353, %v427
    %v441 = vadd.f32 %v354, %v430
    %v442 = vadd.f32 %v355, %v433
    %451 = vrot.lane.b32.xlu0 %v435, 120
    %v452 = vpop.permute.xlu0 %451
    %453 = vrot.lane.b32.xlu0 %v436, 120
    %v454 = vpop.permute.xlu0 %453
    %455 = vrot.lane.b32.xlu0 %v437, 120
    %v456 = vpop.permute.xlu0 %455
    %457 = vrot.lane.b32.xlu0 %v438, 120
    %v458 = vpop.permute.xlu0 %457
    %459 = vrot.lane.b32.xlu0 %v439, 120
    %v460 = vpop.permute.xlu0 %459
    %461 = vrot.lane.b32.xlu0 %v440, 120
    %v462 = vpop.permute.xlu0 %461
    %463 = vrot.lane.b32.xlu0 %v441, 120
    %v464 = vpop.permute.xlu0 %463
    %465 = vrot.lane.b32.xlu0 %v442, 120
    %v466 = vpop.permute.xlu0 %465
    %vm467 = vcmask 64512
    %v468 = vsel %vm467, %v435, 0
    %v470 = vsel %vm467, %v436, 0
    %v472 = vsel %vm467, %v437, 0
    %v474 = vsel %vm467, %v438, 0
    %v476 = vsel %vm467, %v439, 0
    %v478 = vsel %vm467, %v440, 0
    %v480 = vsel %vm467, %v441, 0
    %v482 = vsel %vm467, %v442, 0
    %v484 = vsel %vm467, %v452, 0
    %v486 = vsel %vm467, %v454, 0
    %v488 = vsel %vm467, %v456, 0
    %v490 = vsel %vm467, %v458, 0
    %v492 = vsel %vm467, %v460, 0
    %v494 = vsel %vm467, %v462, 0
    %v496 = vsel %vm467, %v464, 0
    %v498 = vsel %vm467, %v466, 0
    %500 = vmatpush.xpose.msra.mxu0 0.0
    %501 = vmatpush.xpose.msra.mxu0 0.0
    %502 = vmatpush.xpose.msra.mxu0 0.0
    %503 = vmatpush.xpose.msra.mxu0 0.0
    %504 = vmatpush.xpose.msra.mxu0 0.0
    %505 = vmatpush.xpose.msra.mxu0 0.0
    %506 = vmatpush.xpose.msra.mxu0 0.0
    %507 = vmatpush.xpose.msra.mxu0 0.0
    %508 = vmatpush.xpose.msra.mxu0 %v498
    %509 = vmatpush.xpose.msra.mxu0 %v496
    %510 = vmatpush.xpose.msra.mxu0 %v494
    %511 = vmatpush.xpose.msra.mxu0 %v492
    %512 = vmatpush.xpose.msra.mxu0 %v490
    %513 = vmatpush.xpose.msra.mxu0 %v488
    %514 = vmatpush.xpose.msra.mxu0 %v486
    %515 = vmatpush.xpose.msra.mxu0 %v484
    %516 = vmatmul.f32.gmra.mxu0 %v468
    %v517 = vpop.f32.mrf.mxu0
    %v518 = vadd.f32 %v54, %v517
    %519 = vmatmul.f32.gmra.mxu0 %v470
    %v520 = vpop.f32.mrf.mxu0
    %v521 = vadd.f32 %v55, %v520
    %522 = vmatmul.f32.gmra.mxu0 %v472
    %v523 = vpop.f32.mrf.mxu0
    %v524 = vadd.f32 %v56, %v523
    %525 = vmatmul.f32.gmra.mxu0 %v474
    %v526 = vpop.f32.mrf.mxu0
    %v527 = vadd.f32 %v57, %v526
    %528 = vmatmul.f32.gmra.mxu0 %v476
    %v529 = vpop.f32.mrf.mxu0
    %v530 = vadd.f32 %v58, %v529
    %531 = vmatmul.f32.gmra.mxu0 %v478
    %v532 = vpop.f32.mrf.mxu0
    %v533 = vadd.f32 %v59, %v532
    %534 = vmatmul.f32.gmra.mxu0 %v480
    %v535 = vpop.f32.mrf.mxu0
    %v536 = vadd.f32 %v60, %v535
    %537 = vmatmul.f32.gmra.mxu0 %v482
    %v538 = vpop.f32.mrf.mxu0
    %v539 = vadd.f32 %v61, %v538
    %540 = vdwg.mxu0
    %vm541 = vcmask 523264
    %v542 = vsel %vm541, %v518, -inf
    %543 = vmax.xlane.f32.xlu0 %v542
    %v544 = vpop.xlane.xlu0 %543
    %v545 = vsel %vm541, %v521, -inf
    %546 = vmax.xlane.f32.xlu0 %v545
    %v547 = vpop.xlane.xlu0 %546
    %v548 = vsel %vm541, %v524, -inf
    %549 = vmax.xlane.f32.xlu0 %v548
    %v550 = vpop.xlane.xlu0 %549
    %v551 = vsel %vm541, %v527, -inf
    %552 = vmax.xlane.f32.xlu0 %v551
    %v553 = vpop.xlane.xlu0 %552
    %v554 = vsel %vm541, %v530, -inf
    %555 = vmax.xlane.f32.xlu0 %v554
    %v556 = vpop.xlane.xlu0 %555
    %v557 = vsel %vm541, %v533, -inf
    %558 = vmax.xlane.f32.xlu0 %v557
    %v559 = vpop.xlane.xlu0 %558
    %v560 = vsel %vm541, %v536, -inf
    %561 = vmax.xlane.f32.xlu0 %v560
    %v562 = vpop.xlane.xlu0 %561
    %v563 = vsel %vm541, %v539, -inf
    %564 = vmax.xlane.f32.xlu0 %v563
    %v565 = vpop.xlane.xlu0 %564
    %v566 = vsub.f32 %v518, %v544
    %v567 = vsub.f32 %v521, %v547
    %v568 = vsub.f32 %v524, %v550
    %v569 = vsub.f32 %v527, %v553
    %v570 = vsub.f32 %v530, %v556
    %v571 = vsub.f32 %v533, %v559
    %v572 = vsub.f32 %v536, %v562
    %v573 = vsub.f32 %v539, %v565
    %v574 = vmul.f32 %v566, 1.442695
    %v575 = vpow.pop %v574
    %v576 = vmul.f32 %v567, 1.442695
    %v577 = vpow.pop %v576
    %v578 = vmul.f32 %v568, 1.442695
    %v579 = vpow.pop %v578
    %v580 = vmul.f32 %v569, 1.442695
    %v581 = vpow.pop %v580
    %v582 = vmul.f32 %v570, 1.442695
    %v583 = vpow.pop %v582
    %v584 = vmul.f32 %v571, 1.442695
    %v585 = vpow.pop %v584
    %v586 = vmul.f32 %v572, 1.442695
    %v587 = vpow.pop %v586
    %v588 = vmul.f32 %v573, 1.442695
    %v589 = vpow.pop %v588
    %v590 = vsel %vm541, %v575, 0.0
    %591 = vadd.xlane.f32.xlu0 %v590
    %v592 = vpop.xlane.xlu0 %591
    %v593 = vsel %vm541, %v577, 0.0
    %594 = vadd.xlane.f32.xlu0 %v593
    %v595 = vpop.xlane.xlu0 %594
    %v596 = vsel %vm541, %v579, 0.0
    %597 = vadd.xlane.f32.xlu0 %v596
    %v598 = vpop.xlane.xlu0 %597
    %v599 = vsel %vm541, %v581, 0.0
    %600 = vadd.xlane.f32.xlu0 %v599
    %v601 = vpop.xlane.xlu0 %600
    %v602 = vsel %vm541, %v583, 0.0
    %603 = vadd.xlane.f32.xlu0 %v602
    %v604 = vpop.xlane.xlu0 %603
    %v605 = vsel %vm541, %v585, 0.0
    %606 = vadd.xlane.f32.xlu0 %v605
    %v607 = vpop.xlane.xlu0 %606
    %v608 = vsel %vm541, %v587, 0.0
    %609 = vadd.xlane.f32.xlu0 %v608
    %v610 = vpop.xlane.xlu0 %609
    %v611 = vsel %vm541, %v589, 0.0
    %612 = vadd.xlane.f32.xlu0 %v611
    %v613 = vpop.xlane.xlu0 %612
    %v614 = vrcp.pop %v592
    %v615 = vrcp.pop %v595
    %v616 = vrcp.pop %v598
    %v617 = vrcp.pop %v601
    %v618 = vrcp.pop %v604
    %v619 = vrcp.pop %v607
    %v620 = vrcp.pop %v610
    %v621 = vrcp.pop %v613
    %v622 = vmul.f32 %v575, %v614
    %v623 = vmul.f32 %v577, %v615
    %v624 = vmul.f32 %v579, %v616
    %v625 = vmul.f32 %v581, %v617
    %v626 = vmul.f32 %v583, %v618
    %v627 = vmul.f32 %v585, %v619
    %v628 = vmul.f32 %v587, %v620
    %v629 = vmul.f32 %v589, %v621
    %630 = vrot.lane.b32.xlu0 %v435, 112
    %v631 = vpop.permute.xlu0 %630
    %632 = vrot.lane.b32.xlu0 %v436, 112
    %v633 = vpop.permute.xlu0 %632
    %634 = vrot.lane.b32.xlu0 %v437, 112
    %v635 = vpop.permute.xlu0 %634
    %636 = vrot.lane.b32.xlu0 %v438, 112
    %v637 = vpop.permute.xlu0 %636
    %638 = vrot.lane.b32.xlu0 %v439, 112
    %v639 = vpop.permute.xlu0 %638
    %640 = vrot.lane.b32.xlu0 %v440, 112
    %v641 = vpop.permute.xlu0 %640
    %642 = vrot.lane.b32.xlu0 %v441, 112
    %v643 = vpop.permute.xlu0 %642
    %644 = vrot.lane.b32.xlu0 %v442, 112
    %v645 = vpop.permute.xlu0 %644
    %v655 = vsel %vm541, %v622, 0
    %v658 = vsel %vm541, %v623, 0
    %v661 = vsel %vm541, %v624, 0
    %v664 = vsel %vm541, %v625, 0
    %v667 = vsel %vm541, %v626, 0
    %v670 = vsel %vm541, %v627, 0
    %v673 = vsel %vm541, %v628, 0
    %v676 = vsel %vm541, %v629, 0
    %678 = vmatpush.msra.mxu0 0.0
    %679 = vmatpush.msra.mxu0 0.0
    %680 = vmatpush.msra.mxu0 0.0
    %681 = vmatpush.msra.mxu0 0.0
    %682 = vmatpush.msra.mxu0 0.0
    %683 = vmatpush.msra.mxu0 0.0
    %684 = vmatpush.msra.mxu0 0.0
    %685 = vmatpush.msra.mxu0 0.0
    %686 = vmatpush.msra.mxu0 %v645
    %687 = vmatpush.msra.mxu0 %v643
    %688 = vmatpush.msra.mxu0 %v641
    %689 = vmatpush.msra.mxu0 %v639
    %690 = vmatpush.msra.mxu0 %v637
    %691 = vmatpush.msra.mxu0 %v635
    %692 = vmatpush.msra.mxu0 %v633
    %693 = vmatpush.msra.mxu0 %v631
    %694 = vmatmul.f32.gmra.mxu0 %v655
    %v695 = vpop.f32.mrf.mxu0
    %v696 = vadd.f32 0.0, %v695
    %697 = vmatmul.f32.gmra.mxu0 %v658
    %v698 = vpop.f32.mrf.mxu0
    %v699 = vadd.f32 0.0, %v698
    %700 = vmatmul.f32.gmra.mxu0 %v661
    %v701 = vpop.f32.mrf.mxu0
    %v702 = vadd.f32 0.0, %v701
    %703 = vmatmul.f32.gmra.mxu0 %v664
    %v704 = vpop.f32.mrf.mxu0
    %v705 = vadd.f32 0.0, %v704
    %706 = vmatmul.f32.gmra.mxu0 %v667
    %v707 = vpop.f32.mrf.mxu0
    %v708 = vadd.f32 0.0, %v707
    %709 = vmatmul.f32.gmra.mxu0 %v670
    %v710 = vpop.f32.mrf.mxu0
    %v711 = vadd.f32 0.0, %v710
    %712 = vmatmul.f32.gmra.mxu0 %v673
    %v713 = vpop.f32.mrf.mxu0
    %v714 = vadd.f32 0.0, %v713
    %715 = vmatmul.f32.gmra.mxu0 %v676
    %v716 = vpop.f32.mrf.mxu0
    %v717 = vadd.f32 0.0, %v716
    %718 = vdwg.mxu0
    %v720 = vsel %vm541, %v62, 0
    %v723 = vsel %vm541, %v63, 0
    %v726 = vsel %vm541, %v64, 0
    %v729 = vsel %vm541, %v65, 0
    %v732 = vsel %vm541, %v66, 0
    %v735 = vsel %vm541, %v67, 0
    %v738 = vsel %vm541, %v68, 0
    %v741 = vsel %vm541, %v69, 0
    %743 = vmatpush.msra.mxu0 0.0
    %744 = vmatpush.msra.mxu0 0.0
    %745 = vmatpush.msra.mxu0 0.0
    %746 = vmatpush.msra.mxu0 0.0
    %747 = vmatpush.msra.mxu0 0.0
    %748 = vmatpush.msra.mxu0 0.0
    %749 = vmatpush.msra.mxu0 0.0
    %750 = vmatpush.msra.mxu0 0.0
    %751 = vmatpush.msra.mxu0 %v717
    %752 = vmatpush.msra.mxu0 %v714
    %753 = vmatpush.msra.mxu0 %v711
    %754 = vmatpush.msra.mxu0 %v708
    %755 = vmatpush.msra.mxu0 %v705
    %756 = vmatpush.msra.mxu0 %v702
    %757 = vmatpush.msra.mxu0 %v699
    %758 = vmatpush.msra.mxu0 %v696
    %759 = vmatmul.f32.gmra.mxu0 %v720
    %v760 = vpop.f32.mrf.mxu0
    %v761 = vadd.f32 0.0, %v760
    %762 = vmatmul.f32.gmra.mxu0 %v723
    %v763 = vpop.f32.mrf.mxu0
    %v764 = vadd.f32 0.0, %v763
    %765 = vmatmul.f32.gmra.mxu0 %v726
    %v766 = vpop.f32.mrf.mxu0
    %v767 = vadd.f32 0.0, %v766
    %768 = vmatmul.f32.gmra.mxu0 %v729
    %v769 = vpop.f32.mrf.mxu0
    %v770 = vadd.f32 0.0, %v769
    %771 = vmatmul.f32.gmra.mxu0 %v732
    %v772 = vpop.f32.mrf.mxu0
    %v773 = vadd.f32 0.0, %v772
    %774 = vmatmul.f32.gmra.mxu0 %v735
    %v775 = vpop.f32.mrf.mxu0
    %v776 = vadd.f32 0.0, %v775
    %777 = vmatmul.f32.gmra.mxu0 %v738
    %v778 = vpop.f32.mrf.mxu0
    %v779 = vadd.f32 0.0, %v778
    %780 = vmatmul.f32.gmra.mxu0 %v741
    %v781 = vpop.f32.mrf.mxu0
    %v782 = vadd.f32 0.0, %v781
    %783 = vdwg.mxu0
    %v785 = vsel %vm467, %v767, 0
    %v788 = vsel %vm467, %v770, 0
    %790 = vmatpush.msra.mxu0 0.0
    %791 = vmatpush.msra.mxu0 0.0
    %792 = vmatpush.msra.mxu0 0.0
    %793 = vmatpush.msra.mxu0 0.0
    %794 = vmatpush.msra.mxu0 0.0
    %795 = vmatpush.msra.mxu0 0.0
    %796 = vmatpush.msra.mxu0 0.0
    %797 = vmatpush.msra.mxu0 0.0
    %798 = vmatpush.msra.mxu0 0.0
    %799 = vmatpush.msra.mxu0 0.0
    %800 = vmatpush.msra.mxu0 0.0
    %801 = vmatpush.msra.mxu0 0.0
    %802 = vmatpush.msra.mxu0 0.0
    %803 = vmatpush.msra.mxu0 0.0
    %804 = vmatpush.msra.mxu0 0.0
    %805 = vmatpush.msra.mxu0 %v83
    %806 = vmatmul.f32.gmra.mxu0 %v785
    %v807 = vpop.f32.mrf.mxu0
    %v808 = vadd.f32 0.0, %v807
    %809 = vmatmul.f32.gmra.mxu0 %v788
    %v810 = vpop.f32.mrf.mxu0
    %v811 = vadd.f32 0.0, %v810
    %812 = vdwg.mxu0
    %v814 = vsel %vm467, %v761, 0
    %v817 = vsel %vm467, %v764, 0
    %819 = vmatpush.msra.mxu0 0.0
    %820 = vmatpush.msra.mxu0 0.0
    %821 = vmatpush.msra.mxu0 0.0
    %822 = vmatpush.msra.mxu0 0.0
    %823 = vmatpush.msra.mxu0 0.0
    %824 = vmatpush.msra.mxu0 0.0
    %825 = vmatpush.msra.mxu0 0.0
    %826 = vmatpush.msra.mxu0 0.0
    %827 = vmatpush.msra.mxu0 0.0
    %828 = vmatpush.msra.mxu0 0.0
    %829 = vmatpush.msra.mxu0 0.0
    %830 = vmatpush.msra.mxu0 0.0
    %831 = vmatpush.msra.mxu0 0.0
    %832 = vmatpush.msra.mxu0 0.0
    %833 = vmatpush.msra.mxu0 0.0
    %834 = vmatpush.msra.mxu0 %v82
    %835 = vmatmul.f32.gmra.mxu0 %v814
    %v836 = vpop.f32.mrf.mxu0
    %v837 = vadd.f32 %v808, %v836
    %838 = vmatmul.f32.gmra.mxu0 %v817
    %v839 = vpop.f32.mrf.mxu0
    %v840 = vadd.f32 %v811, %v839
    %841 = vdwg.mxu0
    %v843 = vsel %vm467, %v773, 0
    %v846 = vsel %vm467, %v776, 0
    %848 = vmatpush.msra.mxu0 0.0
    %849 = vmatpush.msra.mxu0 0.0
    %850 = vmatpush.msra.mxu0 0.0
    %851 = vmatpush.msra.mxu0 0.0
    %852 = vmatpush.msra.mxu0 0.0
    %853 = vmatpush.msra.mxu0 0.0
    %854 = vmatpush.msra.mxu0 0.0
    %855 = vmatpush.msra.mxu0 0.0
    %856 = vmatpush.msra.mxu0 0.0
    %857 = vmatpush.msra.mxu0 0.0
    %858 = vmatpush.msra.mxu0 0.0
    %859 = vmatpush.msra.mxu0 0.0
    %860 = vmatpush.msra.mxu0 0.0
    %861 = vmatpush.msra.mxu0 0.0
    %862 = vmatpush.msra.mxu0 0.0
    %863 = vmatpush.msra.mxu0 %v84
    %864 = vmatmul.f32.gmra.mxu0 %v843
    %v865 = vpop.f32.mrf.mxu0
    %v866 = vadd.f32 0.0, %v865
    %867 = vmatmul.f32.gmra.mxu0 %v846
    %v868 = vpop.f32.mrf.mxu0
    %v869 = vadd.f32 0.0, %v868
    %870 = vdwg.mxu0
    %v871 = vadd.f32 %v837, %v866
    %v872 = vadd.f32 %v840, %v869
    %v874 = vsel %vm467, %v779, 0
    %v877 = vsel %vm467, %v782, 0
    %879 = vmatpush.msra.mxu0 0.0
    %880 = vmatpush.msra.mxu0 0.0
    %881 = vmatpush.msra.mxu0 0.0
    %882 = vmatpush.msra.mxu0 0.0
    %883 = vmatpush.msra.mxu0 0.0
    %884 = vmatpush.msra.mxu0 0.0
    %885 = vmatpush.msra.mxu0 0.0
    %886 = vmatpush.msra.mxu0 0.0
    %887 = vmatpush.msra.mxu0 0.0
    %888 = vmatpush.msra.mxu0 0.0
    %889 = vmatpush.msra.mxu0 0.0
    %890 = vmatpush.msra.mxu0 0.0
    %891 = vmatpush.msra.mxu0 0.0
    %892 = vmatpush.msra.mxu0 0.0
    %893 = vmatpush.msra.mxu0 0.0
    %894 = vmatpush.msra.mxu0 %v85
    %895 = vmatmul.f32.gmra.mxu0 %v874
    %v896 = vpop.f32.mrf.mxu0
    %v897 = vadd.f32 0.0, %v896
    %898 = vmatmul.f32.gmra.mxu0 %v877
    %v899 = vpop.f32.mrf.mxu0
    %v900 = vadd.f32 0.0, %v899
    %901 = vdwg.mxu0
    %v902 = vadd.f32 %v871, %v897
    %v903 = vadd.f32 %v872, %v900
    %v904 = vperm.slane %v90, 1
    %v905 = vadd.f32 %v902, %v904
    %v906 = vadd.f32 %v903, %v904
    %v907 = vadd.f32 %v905, %v44
    %v908 = vadd.f32 %v906, %v45
    %v909 = vsel %vm92, %v907, 0.0
    %910 = vadd.xlane.f32.xlu0 %v909
    %v911 = vpop.xlane.xlu0 %910
    %v912 = vsel %vm92, %v908, 0.0
    %913 = vadd.xlane.f32.xlu0 %v912
    %v914 = vpop.xlane.xlu0 %913
    %v915 = vrcp.pop 32.0
    %v916 = vmul.f32 32.0, %v915
    %v917 = vsub.f32 1.0, %v916
    %v918 = vmul.f32 %v915, %v917
    %v919 = vadd.f32 %v915, %v918
    %vm920 = vweird.f32 %v915
    %v921 = vsel %vm920, %v915, %v919
    %v922 = vmul.f32 %v911, %v921
    %v923 = vmul.f32 %v914, %v921
    %v924 = vsub.f32 %v907, %v922
    %v925 = vsub.f32 %v908, %v923
    %v926 = vmul.f32 %v924, %v924
    %v927 = vmul.f32 %v925, %v925
    %v928 = vsel %vm92, %v926, 0.0
    %929 = vadd.xlane.f32.xlu0 %v928
    %v930 = vpop.xlane.xlu0 %929
    %v931 = vsel %vm92, %v927, 0.0
    %932 = vadd.xlane.f32.xlu0 %v931
    %v933 = vpop.xlane.xlu0 %932
    %v934 = vmul.f32 %v930, %v921
    %v935 = vmul.f32 %v933, %v921
    %v936 = vadd.f32 %v934, 1e-05
    %v937 = vadd.f32 %v935, 1e-05
    %v938 = vrsqrt.pop %v936
    %v939 = vmul.f32 %v938, %v936
    %v940 = vmul.f32 %v939, %v938
    %v941 = vmul.f32 0.5, %v940
    %v942 = vsub.f32 1.5, %v941
    %v943 = vmul.f32 %v938, %v942
    %vm944 = vweird.f32 %v936
    %vm945 = vweird.f32 %v938
    %vm946 = vmor %vm944, %vm945
    %v947 = vsel %vm946, %v938, %v943
    %v948 = vrsqrt.pop %v937
    %v949 = vmul.f32 %v948, %v937
    %v950 = vmul.f32 %v949, %v948
    %v951 = vmul.f32 0.5, %v950
    %v952 = vsub.f32 1.5, %v951
    %v953 = vmul.f32 %v948, %v952
    %vm954 = vweird.f32 %v937
    %vm955 = vweird.f32 %v948
    %vm956 = vmor %vm954, %vm955
    %v957 = vsel %vm956, %v948, %v953
    %v958 = vmul.f32 %v924, %v947
    %v959 = vmul.f32 %v925, %v957
    %v960 = vperm.slane %v90, 2
    %v961 = vmul.f32 %v958, %v960
    %v962 = vmul.f32 %v959, %v960
    %v963 = vperm.slane %v90, 3
    %v964 = vadd.f32 %v961, %v963
    %v965 = vadd.f32 %v962, %v963
    %v966 = vperm.slane %v90, 4
    %v968 = vsel %vm92, %v964, 0
    %v971 = vsel %vm92, %v965, 0
    %973 = vmatpush.msra.mxu0 0.0
    %974 = vmatpush.msra.mxu0 0.0
    %975 = vmatpush.msra.mxu0 0.0
    %976 = vmatpush.msra.mxu0 0.0
    %977 = vmatpush.msra.mxu0 0.0
    %978 = vmatpush.msra.mxu0 0.0
    %979 = vmatpush.msra.mxu0 0.0
    %980 = vmatpush.msra.mxu0 0.0
    %981 = vmatpush.msra.mxu0 0.0
    %982 = vmatpush.msra.mxu0 0.0
    %983 = vmatpush.msra.mxu0 0.0
    %984 = vmatpush.msra.mxu0 0.0
    %985 = vmatpush.msra.mxu0 %v89
    %986 = vmatpush.msra.mxu0 %v88
    %987 = vmatpush.msra.mxu0 %v87
    %988 = vmatpush.msra.mxu0 %v86
    %989 = vmatmul.f32.gmra.mxu0 %v968
    %v990 = vpop.f32.mrf.mxu0
    %v991 = vadd.f32 %v966, %v990
    %992 = vmatmul.f32.gmra.mxu0 %v971
    %v993 = vpop.f32.mrf.mxu0
    %v994 = vadd.f32 %v966, %v993
    %995 = vdwg.mxu0
    %v996 = vmax.f32 %v991, 0.0
    %v997 = vmax.f32 %v994, 0.0
    %v998 = vperm.slane %v90, 5
    %v1000 = vsel %vm541, %v996, 0
    %v1003 = vsel %vm541, %v997, 0
    %1005 = vmatpush.msra.mxu0 0.0
    %1006 = vmatpush.msra.mxu0 0.0
    %1007 = vmatpush.msra.mxu0 0.0
    %1008 = vmatpush.msra.mxu0 0.0
    %1009 = vmatpush.msra.mxu0 0.0
    %1010 = vmatpush.msra.mxu0 0.0
    %1011 = vmatpush.msra.mxu0 0.0
    %1012 = vmatpush.msra.mxu0 0.0
    %1013 = vmatpush.msra.mxu0 %v77
    %1014 = vmatpush.msra.mxu0 %v76
    %1015 = vmatpush.msra.mxu0 %v75
    %1016 = vmatpush.msra.mxu0 %v74
    %1017 = vmatpush.msra.mxu0 %v73
    %1018 = vmatpush.msra.mxu0 %v72
    %1019 = vmatpush.msra.mxu0 %v71
    %1020 = vmatpush.msra.mxu0 %v70
    %1021 = vmatmul.f32.gmra.mxu0 %v1000
    %v1022 = vpop.f32.mrf.mxu0
    %v1023 = vadd.f32 %v998, %v1022
    %1024 = vmatmul.f32.gmra.mxu0 %v1003
    %v1025 = vpop.f32.mrf.mxu0
    %v1026 = vadd.f32 %v998, %v1025
    %1027 = vdwg.mxu0
    %v1028 = vadd.f32 %v1023, %v964
    %v1029 = vadd.f32 %v1026, %v965
    %v1030 = vsel %vm92, %v1028, 0.0
    %1031 = vadd.xlane.f32.xlu0 %v1030
    %v1032 = vpop.xlane.xlu0 %1031
    %v1033 = vsel %vm92, %v1029, 0.0
    %1034 = vadd.xlane.f32.xlu0 %v1033
    %v1035 = vpop.xlane.xlu0 %1034
    %v1036 = vmul.f32 %v1032, %v921
    %v1037 = vmul.f32 %v1035, %v921
    %v1038 = vsub.f32 %v1028, %v1036
    %v1039 = vsub.f32 %v1029, %v1037
    %v1040 = vmul.f32 %v1038, %v1038
    %v1041 = vmul.f32 %v1039, %v1039
    %v1042 = vsel %vm92, %v1040, 0.0
    %1043 = vadd.xlane.f32.xlu0 %v1042
    %v1044 = vpop.xlane.xlu0 %1043
    %v1045 = vsel %vm92, %v1041, 0.0
    %1046 = vadd.xlane.f32.xlu0 %v1045
    %v1047 = vpop.xlane.xlu0 %1046
    %v1048 = vmul.f32 %v1044, %v921
    %v1049 = vmul.f32 %v1047, %v921
    %v1050 = vadd.f32 %v1048, 1e-05
    %v1051 = vadd.f32 %v1049, 1e-05
    %v1052 = vrsqrt.pop %v1050
    %v1053 = vmul.f32 %v1052, %v1050
    %v1054 = vmul.f32 %v1053, %v1052
    %v1055 = vmul.f32 0.5, %v1054
    %v1056 = vsub.f32 1.5, %v1055
    %v1057 = vmul.f32 %v1052, %v1056
    %vm1058 = vweird.f32 %v1050
    %vm1059 = vweird.f32 %v1052
    %vm1060 = vmor %vm1058, %vm1059
    %v1061 = vsel %vm1060, %v1052, %v1057
    %v1062 = vrsqrt.pop %v1051
    %v1063 = vmul.f32 %v1062, %v1051
    %v1064 = vmul.f32 %v1063, %v1062
    %v1065 = vmul.f32 0.5, %v1064
    %v1066 = vsub.f32 1.5, %v1065
    %v1067 = vmul.f32 %v1062, %v1066
    %vm1068 = vweird.f32 %v1051
    %vm1069 = vweird.f32 %v1062
    %vm1070 = vmor %vm1068, %vm1069
    %v1071 = vsel %vm1070, %v1062, %v1067
    %v1072 = vmul.f32 %v1038, %v1061
    %v1073 = vmul.f32 %v1039, %v1071
    %v1074 = vperm.slane %v90, 6
    %v1075 = vmul.f32 %v1072, %v1074
    %v1076 = vmul.f32 %v1073, %v1074
    %v1077 = vperm.slane %v90, 7
    %v1078 = vadd.f32 %v1075, %v1077
    %v1079 = vadd.f32 %v1076, %v1077
    %1080 = vst.msk [vmem:[#allocation7] sm:$0xff] %vm92, %v1078
    %1081 = vst.msk [vmem:[#allocation7 + $0x8] sm:$0xff] %vm92, %v1079
    // Predicated region
    $region18: #{encoder_forward.1} parent=1 // pred_check
      _
    $region19: #{encoder_forward.1} parent=1 // pred_check_branch
      %1083 = sbr.rel (0) target = $region21
    $region20: #{encoder_forward.1} parent=1 // pred_region
      %1085 = vsyncadd [#allocation4], 0
      %s1086 = sshll.u32 [#allocation7], 4
      %s1087 = int_to_ptr.vmem [resolvable:$true] %s1086
      %s1088 = sshll.u32 %s2, 4
      %s1089 = int_to_ptr.hbm [resolvable:$true] %s1088
      %1094 = dma.vmem_to_hbm [thread:$0]  %s1087, 256, %s1089, [#allocation4], 128, 128, 8
    $region21: #{encoder_forward.1} parent=1 // pred_fallthru
      _
    // Predicated region
    $region22: #{encoder_forward.1} parent=1 // pred_check
      _
    $region23: #{encoder_forward.1} parent=1 // pred_check_branch
      %1096 = sbr.rel (0) target = $region25
    $region24: #{encoder_forward.1} parent=1 // pred_region
      %1098 = dma.done [#allocation4], 256
    $region25: #{encoder_forward.1} parent=1 // pred_fallthru
      _
    %1099 = vsyncpa [#allocation3], 1
    %1100 = vsyncpa [#allocation6], 1
    %1101 = vsyncpa [#allocation4], 1

</llo_original>
